<compile_context>
chip_gen: v6e
topology: v6e:2x2x1
jax: 0.10.0
libtpu: 0.0.40
codegen_flags: <defaults>
</compile_context>

<pallas_src>
import math

import numpy as np
import jax
import jax.numpy as jnp
from jax.experimental import pallas as pl
from jax.experimental.pallas import tpu as pltpu


# ----------------------------------------------------------------------------
# static index helpers (pure python / numpy, run at trace time)
# ----------------------------------------------------------------------------
def _src_indices(out_size, up_size, pad_before):
    """For each output index: source index in the *original* (pre-upsample) x2.
    Reflection-pad into the 2x-upsampled grid, then nearest (//2).  Negative
    pads fall out as plain cropping (no reflection branch triggers)."""
    idx = np.empty((out_size,), dtype=np.int64)
    for o in range(out_size):
        u = o - pad_before
        if u < 0:
            u = -u
        if u >= up_size:
            u = 2 * (up_size - 1) - u
        idx[o] = u // 2
    return idx


def _dilation_plan(w2):
    """Roll/select schedule that spreads a length-w2 lane vector to even lanes
    of a 2*next_pow2(w2) lane register (then odd lanes are filled by a +1 roll).
    Returns (register_width, [(shift, block_width), ...])."""
    n = 1
    while n < w2:
        n *= 2
    two_n = 2 * n
    stages = []
    w = two_n
    while w >= 4:
        stages.append((w // 4, w))
        w //= 2
    return two_n, stages


def _check_dilation_plan(w2):
    """Numpy self-check of the dilation network for this w2 (trace-time only).
    If it ever failed we fall back to an exact per-lane construction."""
    two_n, stages = _dilation_plan(w2)
    x = np.concatenate([np.arange(1, w2 + 1, dtype=np.int64),
                        np.zeros(two_n - w2, dtype=np.int64)])
    lane = np.arange(two_n)
    for shift, bw in stages:
        mask = ((lane % bw) >= bw // 2) & ((lane % bw) < bw // 2 + bw // 4)
        x = np.where(mask, np.roll(x, shift), x)
    x = np.where(lane % 2 == 1, np.roll(x, 1), x)
    want = np.repeat(np.arange(1, w2 + 1, dtype=np.int64), 2)
    return bool(np.array_equal(x[:2 * w2], want))


def _pick_bc(nc, bytes_per_channel, dtype, budget=8 << 20):
    """Channels per grid step.
    - Output/input block sublane dim must be a multiple of the dtype sublane
      pack (8 f32 / 16 bf16 / 32 int8) or the full N*C extent.
    - Keep the per-step in+out working set <= ~8 MiB so the double-buffered
      footprint stays <= ~16 MiB (fits v7x's 64 MiB VMEM, 32 MiB scoped).
    - Prefer >=2 evenly sized channel steps so the pipeline / megacore get work.
    """
    itemsize = np.dtype(dtype).itemsize
    sub = max(8, 32 // itemsize)
    cands = [d for d in range(1, nc + 1)
             if nc % d == 0 and (d % sub == 0 or d == nc)]
    fit = [d for d in cands if d * bytes_per_channel <= budget]
    if not fit:
        # TODO(synk): also tile the spatial (lane) axis if a single channel's
        # in+out row ever exceeds the budget (not reachable for this module's
        # typical feature-map sizes).
        return min(cands)
    multi = [d for d in fit if nc // d >= 2]
    return max(multi) if multi else max(fit)


def _rows_per_chunk(out_w, max_lanes=1024):
    """Output rows assembled/stored per chunk: lane-dense (multiple of 128
    lanes) when that is affordable, otherwise just bounded by max_lanes."""
    r_align = 128 // math.gcd(out_w, 128)   # smallest r with r*out_w % 128 == 0
    if r_align * out_w <= max_lanes:
        return r_align * max(1, max_lanes // (r_align * out_w))
    return max(1, max_lanes // out_w)


# ----------------------------------------------------------------------------
# kernel
# ----------------------------------------------------------------------------
def _make_kernel(H2, W2, out_w, out_h, h_idx, w_idx, left, right,
                 rows_per_group, n_groups, rows_per_chunk, structured):
    h_idx = [int(v) for v in h_idx]
    w_idx = [int(v) for v in w_idx]
    col_lo = max(0, left)                    # first non-reflected output column
    col_hi = out_w - max(0, right)           # one past last non-reflected column
    up_lo, up_hi = col_lo - left, col_hi - left   # slice of the 2x-upsampled row
    two_n, stages = _dilation_plan(W2)

    def kernel(x_ref, o_ref):
        dt = x_ref.dtype
        bc = x_ref.shape[0]

        # lane-index masks of the dilation network, hoisted out of every loop
        lane = jax.lax.broadcasted_iota(jnp.int32, (1, two_n), 1)
        masks = [((lane % bw) >= (bw // 2)) & ((lane % bw) < (bw // 2 + bw // 4))
                 for (_, bw) in stages]
        odd = (lane % 2) == 1
        zpad = jnp.zeros((bc, two_n - W2), dt)

        def upsample2x(r):
            """(BC, W2) -> (BC, 2*W2) nearest 2x upsample along lanes."""
            if structured:
                x = jnp.concatenate([r, zpad], axis=1)          # (BC, two_n)
                for (shift, _), m in zip(stages, masks):
                    x = jnp.where(m, jnp.roll(x, shift, axis=1), x)
                x = jnp.where(odd, jnp.roll(x, 1, axis=1), x)   # fill odd lanes
                return x[:, :2 * W2]
            # exact fallback (only if the numpy self-check ever failed)
            return jnp.concatenate(
                [r[:, k // 2:k // 2 + 1] for k in range(2 * W2)], axis=1)

        def build_row(h):
            """One fully padded output row from source row h: <= left+1+right
            concatenated pieces (reflect edges are single source lanes)."""
            r = x_ref[:, h * W2:(h + 1) * W2]                   # free lane slice
            up = upsample2x(r)
            pieces = [r[:, w_idx[o]:w_idx[o] + 1] for o in range(col_lo)]
            if up_hi > up_lo:
                pieces.append(up[:, up_lo:up_hi])
            pieces += [r[:, w_idx[o]:w_idx[o] + 1] for o in range(col_hi, out_w)]
            return pieces[0] if len(pieces) == 1 else jnp.concatenate(pieces, axis=1)

        def emit_rows(row_lo, row_hi):
            """Assemble output rows [row_lo, row_hi) and store them in bounded,
            lane-dense chunks (live vregs stay small, stores stay unmasked)."""
            n_rows = row_hi - row_lo
            for c0 in range(0, n_rows, rows_per_chunk):
                c1 = min(c0 + rows_per_chunk, n_rows)
                cache, pieces = {}, []
                for o in range(row_lo + c0, row_lo + c1):
                    h = h_idx[o]
                    if h not in cache:
                        cache[h] = build_row(h)
                    pieces.append(cache[h])
                chunk = pieces[0] if len(pieces) == 1 else jnp.concatenate(pieces, axis=1)
                o_ref[:, c0 * out_w:c1 * out_w] = chunk.astype(o_ref.dtype)

        if n_groups == 1:
            emit_rows(0, out_h)
        else:
            g = pl.program_id(1)
            for gi in range(n_groups):
                @pl.when(g == gi)
                def _(gi=gi):
                    emit_rows(gi * rows_per_group, (gi + 1) * rows_per_group)

    return kernel


# ----------------------------------------------------------------------------
# wrapper
# ----------------------------------------------------------------------------
def upsample_reshape_eval(x1, x2):
    """Pallas implementation of UpsampleReshape_eval.forward(x1, x2) (NCHW)."""
    N, C, H1, W1 = x1.shape
    N2, C2, H2, W2 = x2.shape
    assert (N, C) == (N2, C2), "x1 and x2 must share batch/channel dims"

    H2u, W2u = 2 * H2, 2 * W2   # nn.Upsample(scale_factor=2), mode='nearest'

    # Padding exactly as in the PyTorch module (int(d/2) truncates toward 0).
    left = right = top = bot = 0
    if W1 != W2u:
        d = W1 - W2u
        left = int(d / 2)
        right = int(d - left)
    if H1 != H2u:
        d = H1 - H2u
        top = int(d / 2)
        bot = int(d - top)
    # TODO(synk): negative pads are treated as cropping; ReflectionPad2d would
    # reject them, so this path should be unreachable for valid inputs.

    out_h = H2u + top + bot
    out_w = W2u + left + right
    out_flat = out_h * out_w

    h_idx = _src_indices(out_h, H2u, top)
    w_idx = _src_indices(out_w, W2u, left)

    NC = N * C
    itemsize = np.dtype(x2.dtype).itemsize
    BC = _pick_bc(NC, (H2 * W2 + out_flat) * itemsize, x2.dtype)
    nc_blocks = NC // BC

    # Second "parallel" grid axis over output-row groups when the channel grid
    # would otherwise have a single step (keeps v7x's 2nd TC busy and lets the
    # BlockSpec pipeline overlap).  Only when the split keeps the out block's
    # lane extent a multiple of 128.
    n_groups = 1
    if nc_blocks < 2 and out_h % 2 == 0 and ((out_h // 2) * out_w) % 128 == 0:
        n_groups = 2
    rows_per_group = out_h // n_groups

    rows_per_chunk = _rows_per_chunk(out_w)
    structured = _check_dilation_plan(W2)

    kernel = _make_kernel(H2, W2, out_w, out_h, h_idx, w_idx, left, right,
                          rows_per_group, n_groups, rows_per_chunk, structured)

    x2_flat = x2.reshape(NC, H2 * W2)   # contiguous reshape (free)

    block_bytes = BC * (H2 * W2 + out_flat) * itemsize
    vmem_limit = int(min(128 << 20, max(32 << 20, 4 * block_bytes)))

    out2d = pl.pallas_call(
        kernel,
        out_shape=jax.ShapeDtypeStruct((NC, out_flat), x2.dtype),
        grid_spec=pltpu.PrefetchScalarGridSpec(
            num_scalar_prefetch=0,
            grid=(nc_blocks, n_groups),
            in_specs=[pl.BlockSpec((BC, H2 * W2), lambda b, g: (b, 0))],
            out_specs=pl.BlockSpec((BC, rows_per_group * out_w),
                                   lambda b, g: (b, g)),
        ),
        compiler_params=pltpu.CompilerParams(
            dimension_semantics=("parallel", "parallel"),
            vmem_limit_bytes=vmem_limit,
        ),
    )(x2_flat)

    # Undo the lane-dense flattening (contiguous reshape, no data shuffle).
    return out2d.reshape(N, C, out_h, out_w)


def _reference(x1, x2):
    """Pure-JAX reference of the PyTorch forward (validation only)."""
    N, C, H1, W1 = x1.shape
    x2u = jnp.repeat(jnp.repeat(x2, 2, axis=2), 2, axis=3)
    H2u, W2u = x2u.shape[2], x2u.shape[3]
    dW, dH = W1 - W2u, H1 - H2u
    left = int(dW / 2)
    right = int(dW - left)
    top = int(dH / 2)
    bot = int(dH - top)
    return jnp.pad(x2u, ((0, 0), (0, 0), (top, bot), (left, right)),
                   mode="reflect")


if __name__ == "__main__":
    key = jax.random.PRNGKey(0)
    k1, k2 = jax.random.split(key)
    # x1 gives the target spatial size; x2 is upsampled 2x then reflection-padded.
    x1 = jax.random.normal(k1, (2, 4, 16, 16), dtype=jnp.float32)
    x2 = jax.random.normal(k2, (2, 4, 7, 7), dtype=jnp.float32)

    out = jax.block_until_ready(upsample_reshape_eval(x1, x2))

    ref = _reference(x1, x2)
    assert out.shape == ref.shape == (2, 4, 16, 16)
    assert bool(jnp.array_equal(out, ref))   # pure data movement -> exact
    print("KERNEL_OK")
</pallas_src>

<mosaic_0001>
module attributes {stable_mosaic.version = 11 : i64} {
  func.func @kernel(%arg0: i32, %arg1: i32, %arg2: memref<8x49xf32, #tpu.memory_space<vmem>>, %arg3: memref<8x128xf32, #tpu.memory_space<vmem>>) attributes {dimension_semantics = [#tpu.dimension_semantics<parallel>, #tpu.dimension_semantics<parallel>], iteration_bounds = array<i64: 1, 2>, scalar_prefetch = 0 : i64, scratch_operands = 0 : i64, tpu.core_type = #tpu.core_type<tc>, window_params = [{transform_indices = @transform_0, window_bounds = array<i64: 8, 49>}, {transform_indices = @transform_1, window_bounds = array<i64: 8, 128>}]} {
    %0 = tpu.iota {dimensions = array<i32: 1>} : vector<1x16xi32>
    %c16_i32 = arith.constant 16 : i32
    %c0_i32 = arith.constant 0 : i32
    %1 = arith.cmpi eq, %c16_i32, %c0_i32 : i32
    %c1_i32 = arith.constant 1 : i32
    %2 = arith.select %1, %c1_i32, %c16_i32 : i32
    %3 = vector.broadcast %2 : i32 to vector<1x16xi32>
    %4 = arith.remsi %0, %3 : vector<1x16xi32>
    %c0_i32_0 = arith.constant 0 : i32
    %5 = vector.broadcast %c0_i32_0 : i32 to vector<1x16xi32>
    %6 = arith.cmpi ne, %4, %5 : vector<1x16xi32>
    %c0_i32_1 = arith.constant 0 : i32
    %7 = vector.broadcast %c0_i32_1 : i32 to vector<1x16xi32>
    %8 = arith.cmpi slt, %4, %7 : vector<1x16xi32>
    %c0_i32_2 = arith.constant 0 : i32
    %9 = arith.cmpi slt, %2, %c0_i32_2 : i32
    %10 = vector.broadcast %9 : i1 to vector<1x16xi1>
    %11 = vector.broadcast %10 : vector<1x16xi1> to vector<1x16xi1>
    %12 = arith.xori %8, %11 : vector<1x16xi1>
    %13 = arith.andi %12, %6 : vector<1x16xi1>
    %14 = vector.broadcast %2 : i32 to vector<1x16xi32>
    %15 = arith.addi %4, %14 : vector<1x16xi32>
    %16 = arith.select %13, %15, %4 : vector<1x16xi1>, vector<1x16xi32>
    %c8_i32 = arith.constant 8 : i32
    %17 = vector.broadcast %c8_i32 : i32 to vector<1x16xi32>
    %18 = arith.cmpi sge, %16, %17 : vector<1x16xi32>
    %c16_i32_3 = arith.constant 16 : i32
    %c0_i32_4 = arith.constant 0 : i32
    %19 = arith.cmpi eq, %c16_i32_3, %c0_i32_4 : i32
    %c1_i32_5 = arith.constant 1 : i32
    %20 = arith.select %19, %c1_i32_5, %c16_i32_3 : i32
    %21 = vector.broadcast %20 : i32 to vector<1x16xi32>
    %22 = arith.remsi %0, %21 : vector<1x16xi32>
    %c0_i32_6 = arith.constant 0 : i32
    %23 = vector.broadcast %c0_i32_6 : i32 to vector<1x16xi32>
    %24 = arith.cmpi ne, %22, %23 : vector<1x16xi32>
    %c0_i32_7 = arith.constant 0 : i32
    %25 = vector.broadcast %c0_i32_7 : i32 to vector<1x16xi32>
    %26 = arith.cmpi slt, %22, %25 : vector<1x16xi32>
    %c0_i32_8 = arith.constant 0 : i32
    %27 = arith.cmpi slt, %20, %c0_i32_8 : i32
    %28 = vector.broadcast %27 : i1 to vector<1x16xi1>
    %29 = vector.broadcast %28 : vector<1x16xi1> to vector<1x16xi1>
    %30 = arith.xori %26, %29 : vector<1x16xi1>
    %31 = arith.andi %30, %24 : vector<1x16xi1>
    %32 = vector.broadcast %20 : i32 to vector<1x16xi32>
    %33 = arith.addi %22, %32 : vector<1x16xi32>
    %34 = arith.select %31, %33, %22 : vector<1x16xi1>, vector<1x16xi32>
    %c12_i32 = arith.constant 12 : i32
    %35 = vector.broadcast %c12_i32 : i32 to vector<1x16xi32>
    %36 = arith.cmpi slt, %34, %35 : vector<1x16xi32>
    %37 = arith.andi %18, %36 : vector<1x16xi1>
    %c8_i32_9 = arith.constant 8 : i32
    %c0_i32_10 = arith.constant 0 : i32
    %38 = arith.cmpi eq, %c8_i32_9, %c0_i32_10 : i32
    %c1_i32_11 = arith.constant 1 : i32
    %39 = arith.select %38, %c1_i32_11, %c8_i32_9 : i32
    %40 = vector.broadcast %39 : i32 to vector<1x16xi32>
    %41 = arith.remsi %0, %40 : vector<1x16xi32>
    %c0_i32_12 = arith.constant 0 : i32
    %42 = vector.broadcast %c0_i32_12 : i32 to vector<1x16xi32>
    %43 = arith.cmpi ne, %41, %42 : vector<1x16xi32>
    %c0_i32_13 = arith.constant 0 : i32
    %44 = vector.broadcast %c0_i32_13 : i32 to vector<1x16xi32>
    %45 = arith.cmpi slt, %41, %44 : vector<1x16xi32>
    %c0_i32_14 = arith.constant 0 : i32
    %46 = arith.cmpi slt, %39, %c0_i32_14 : i32
    %47 = vector.broadcast %46 : i1 to vector<1x16xi1>
    %48 = vector.broadcast %47 : vector<1x16xi1> to vector<1x16xi1>
    %49 = arith.xori %45, %48 : vector<1x16xi1>
    %50 = arith.andi %49, %43 : vector<1x16xi1>
    %51 = vector.broadcast %39 : i32 to vector<1x16xi32>
    %52 = arith.addi %41, %51 : vector<1x16xi32>
    %53 = arith.select %50, %52, %41 : vector<1x16xi1>, vector<1x16xi32>
    %c4_i32 = arith.constant 4 : i32
    %54 = vector.broadcast %c4_i32 : i32 to vector<1x16xi32>
    %55 = arith.cmpi sge, %53, %54 : vector<1x16xi32>
    %c8_i32_15 = arith.constant 8 : i32
    %c0_i32_16 = arith.constant 0 : i32
    %56 = arith.cmpi eq, %c8_i32_15, %c0_i32_16 : i32
    %c1_i32_17 = arith.constant 1 : i32
    %57 = arith.select %56, %c1_i32_17, %c8_i32_15 : i32
    %58 = vector.broadcast %57 : i32 to vector<1x16xi32>
    %59 = arith.remsi %0, %58 : vector<1x16xi32>
    %c0_i32_18 = arith.constant 0 : i32
    %60 = vector.broadcast %c0_i32_18 : i32 to vector<1x16xi32>
    %61 = arith.cmpi ne, %59, %60 : vector<1x16xi32>
    %c0_i32_19 = arith.constant 0 : i32
    %62 = vector.broadcast %c0_i32_19 : i32 to vector<1x16xi32>
    %63 = arith.cmpi slt, %59, %62 : vector<1x16xi32>
    %c0_i32_20 = arith.constant 0 : i32
    %64 = arith.cmpi slt, %57, %c0_i32_20 : i32
    %65 = vector.broadcast %64 : i1 to vector<1x16xi1>
    %66 = vector.broadcast %65 : vector<1x16xi1> to vector<1x16xi1>
    %67 = arith.xori %63, %66 : vector<1x16xi1>
    %68 = arith.andi %67, %61 : vector<1x16xi1>
    %69 = vector.broadcast %57 : i32 to vector<1x16xi32>
    %70 = arith.addi %59, %69 : vector<1x16xi32>
    %71 = arith.select %68, %70, %59 : vector<1x16xi1>, vector<1x16xi32>
    %c6_i32 = arith.constant 6 : i32
    %72 = vector.broadcast %c6_i32 : i32 to vector<1x16xi32>
    %73 = arith.cmpi slt, %71, %72 : vector<1x16xi32>
    %74 = arith.andi %55, %73 : vector<1x16xi1>
    %c4_i32_21 = arith.constant 4 : i32
    %c0_i32_22 = arith.constant 0 : i32
    %75 = arith.cmpi eq, %c4_i32_21, %c0_i32_22 : i32
    %c1_i32_23 = arith.constant 1 : i32
    %76 = arith.select %75, %c1_i32_23, %c4_i32_21 : i32
    %77 = vector.broadcast %76 : i32 to vector<1x16xi32>
    %78 = arith.remsi %0, %77 : vector<1x16xi32>
    %c0_i32_24 = arith.constant 0 : i32
    %79 = vector.broadcast %c0_i32_24 : i32 to vector<1x16xi32>
    %80 = arith.cmpi ne, %78, %79 : vector<1x16xi32>
    %c0_i32_25 = arith.constant 0 : i32
    %81 = vector.broadcast %c0_i32_25 : i32 to vector<1x16xi32>
    %82 = arith.cmpi slt, %78, %81 : vector<1x16xi32>
    %c0_i32_26 = arith.constant 0 : i32
    %83 = arith.cmpi slt, %76, %c0_i32_26 : i32
    %84 = vector.broadcast %83 : i1 to vector<1x16xi1>
    %85 = vector.broadcast %84 : vector<1x16xi1> to vector<1x16xi1>
    %86 = arith.xori %82, %85 : vector<1x16xi1>
    %87 = arith.andi %86, %80 : vector<1x16xi1>
    %88 = vector.broadcast %76 : i32 to vector<1x16xi32>
    %89 = arith.addi %78, %88 : vector<1x16xi32>
    %90 = arith.select %87, %89, %78 : vector<1x16xi1>, vector<1x16xi32>
    %c2_i32 = arith.constant 2 : i32
    %91 = vector.broadcast %c2_i32 : i32 to vector<1x16xi32>
    %92 = arith.cmpi sge, %90, %91 : vector<1x16xi32>
    %c4_i32_27 = arith.constant 4 : i32
    %c0_i32_28 = arith.constant 0 : i32
    %93 = arith.cmpi eq, %c4_i32_27, %c0_i32_28 : i32
    %c1_i32_29 = arith.constant 1 : i32
    %94 = arith.select %93, %c1_i32_29, %c4_i32_27 : i32
    %95 = vector.broadcast %94 : i32 to vector<1x16xi32>
    %96 = arith.remsi %0, %95 : vector<1x16xi32>
    %c0_i32_30 = arith.constant 0 : i32
    %97 = vector.broadcast %c0_i32_30 : i32 to vector<1x16xi32>
    %98 = arith.cmpi ne, %96, %97 : vector<1x16xi32>
    %c0_i32_31 = arith.constant 0 : i32
    %99 = vector.broadcast %c0_i32_31 : i32 to vector<1x16xi32>
    %100 = arith.cmpi slt, %96, %99 : vector<1x16xi32>
    %c0_i32_32 = arith.constant 0 : i32
    %101 = arith.cmpi slt, %94, %c0_i32_32 : i32
    %102 = vector.broadcast %101 : i1 to vector<1x16xi1>
    %103 = vector.broadcast %102 : vector<1x16xi1> to vector<1x16xi1>
    %104 = arith.xori %100, %103 : vector<1x16xi1>
    %105 = arith.andi %104, %98 : vector<1x16xi1>
    %106 = vector.broadcast %94 : i32 to vector<1x16xi32>
    %107 = arith.addi %96, %106 : vector<1x16xi32>
    %108 = arith.select %105, %107, %96 : vector<1x16xi1>, vector<1x16xi32>
    %c3_i32 = arith.constant 3 : i32
    %109 = vector.broadcast %c3_i32 : i32 to vector<1x16xi32>
    %110 = arith.cmpi slt, %108, %109 : vector<1x16xi32>
    %111 = arith.andi %92, %110 : vector<1x16xi1>
    %c2_i32_33 = arith.constant 2 : i32
    %c0_i32_34 = arith.constant 0 : i32
    %112 = arith.cmpi eq, %c2_i32_33, %c0_i32_34 : i32
    %c1_i32_35 = arith.constant 1 : i32
    %113 = arith.select %112, %c1_i32_35, %c2_i32_33 : i32
    %114 = vector.broadcast %113 : i32 to vector<1x16xi32>
    %115 = arith.remsi %0, %114 : vector<1x16xi32>
    %c0_i32_36 = arith.constant 0 : i32
    %116 = vector.broadcast %c0_i32_36 : i32 to vector<1x16xi32>
    %117 = arith.cmpi ne, %115, %116 : vector<1x16xi32>
    %c0_i32_37 = arith.constant 0 : i32
    %118 = vector.broadcast %c0_i32_37 : i32 to vector<1x16xi32>
    %119 = arith.cmpi slt, %115, %118 : vector<1x16xi32>
    %c0_i32_38 = arith.constant 0 : i32
    %120 = arith.cmpi slt, %113, %c0_i32_38 : i32
    %121 = vector.broadcast %120 : i1 to vector<1x16xi1>
    %122 = vector.broadcast %121 : vector<1x16xi1> to vector<1x16xi1>
    %123 = arith.xori %119, %122 : vector<1x16xi1>
    %124 = arith.andi %123, %117 : vector<1x16xi1>
    %125 = vector.broadcast %113 : i32 to vector<1x16xi32>
    %126 = arith.addi %115, %125 : vector<1x16xi32>
    %127 = arith.select %124, %126, %115 : vector<1x16xi1>, vector<1x16xi32>
    %c1_i32_39 = arith.constant 1 : i32
    %128 = vector.broadcast %c1_i32_39 : i32 to vector<1x16xi32>
    %129 = arith.cmpi eq, %127, %128 : vector<1x16xi32>
    %cst = arith.constant 0.000000e+00 : f32
    %130 = vector.broadcast %cst : f32 to vector<8x9xf32>
    %c0_i32_40 = arith.constant 0 : i32
    %131 = arith.cmpi eq, %arg1, %c0_i32_40 : i32
    %132 = arith.extui %131 : i1 to i32
    %c0_i32_41 = arith.constant 0 : i32
    %133 = arith.cmpi ne, %132, %c0_i32_41 : i32
    scf.if %133 {
      %c0 = arith.constant 0 : index
      %c0_44 = arith.constant 0 : index
      %137 = vector.load %arg2[%c0, %c0_44] : memref<8x49xf32, #tpu.memory_space<vmem>>, vector<8x7xf32>
      %138 = tpu.concatenate %137, %130 in 1 : vector<8x7xf32>, vector<8x9xf32> -> vector<8x16xf32>
      %139 = vector.extract_strided_slice %138 {offsets = [0, 12], sizes = [8, 4], strides = [1, 1]} : vector<8x16xf32> to vector<8x4xf32>
      %140 = vector.extract_strided_slice %138 {offsets = [0, 0], sizes = [8, 12], strides = [1, 1]} : vector<8x16xf32> to vector<8x12xf32>
      %141 = tpu.concatenate %139, %140 in 1 : vector<8x4xf32>, vector<8x12xf32> -> vector<8x16xf32>
      %142 = vector.shape_cast %37 : vector<1x16xi1> to vector<1x16xi1>
      %143 = vector.broadcast %142 : vector<1x16xi1> to vector<8x16xi1>
      %144 = arith.select %143, %141, %138 : vector<8x16xi1>, vector<8x16xf32>
      %145 = vector.extract_strided_slice %144 {offsets = [0, 14], sizes = [8, 2], strides = [1, 1]} : vector<8x16xf32> to vector<8x2xf32>
      %146 = vector.extract_strided_slice %144 {offsets = [0, 0], sizes = [8, 14], strides = [1, 1]} : vector<8x16xf32> to vector<8x14xf32>
      %147 = tpu.concatenate %145, %146 in 1 : vector<8x2xf32>, vector<8x14xf32> -> vector<8x16xf32>
      %148 = vector.shape_cast %74 : vector<1x16xi1> to vector<1x16xi1>
      %149 = vector.broadcast %148 : vector<1x16xi1> to vector<8x16xi1>
      %150 = arith.select %149, %147, %144 : vector<8x16xi1>, vector<8x16xf32>
      %151 = vector.extract_strided_slice %150 {offsets = [0, 15], sizes = [8, 1], strides = [1, 1]} : vector<8x16xf32> to vector<8x1xf32>
      %152 = vector.extract_strided_slice %150 {offsets = [0, 0], sizes = [8, 15], strides = [1, 1]} : vector<8x16xf32> to vector<8x15xf32>
      %153 = tpu.concatenate %151, %152 in 1 : vector<8x1xf32>, vector<8x15xf32> -> vector<8x16xf32>
      %154 = vector.shape_cast %111 : vector<1x16xi1> to vector<1x16xi1>
      %155 = vector.broadcast %154 : vector<1x16xi1> to vector<8x16xi1>
      %156 = arith.select %155, %153, %150 : vector<8x16xi1>, vector<8x16xf32>
      %157 = vector.extract_strided_slice %156 {offsets = [0, 15], sizes = [8, 1], strides = [1, 1]} : vector<8x16xf32> to vector<8x1xf32>
      %158 = vector.extract_strided_slice %156 {offsets = [0, 0], sizes = [8, 15], strides = [1, 1]} : vector<8x16xf32> to vector<8x15xf32>
      %159 = tpu.concatenate %157, %158 in 1 : vector<8x1xf32>, vector<8x15xf32> -> vector<8x16xf32>
      %160 = vector.shape_cast %129 : vector<1x16xi1> to vector<1x16xi1>
      %161 = vector.broadcast %160 : vector<1x16xi1> to vector<8x16xi1>
      %162 = arith.select %161, %159, %156 : vector<8x16xi1>, vector<8x16xf32>
      %163 = vector.extract_strided_slice %162 {offsets = [0, 0], sizes = [8, 14], strides = [1, 1]} : vector<8x16xf32> to vector<8x14xf32>
      %164 = vector.extract_strided_slice %137 {offsets = [0, 0], sizes = [8, 1], strides = [1, 1]} : vector<8x7xf32> to vector<8x1xf32>
      %165 = vector.extract_strided_slice %137 {offsets = [0, 6], sizes = [8, 1], strides = [1, 1]} : vector<8x7xf32> to vector<8x1xf32>
      %166 = tpu.concatenate %164, %163, %165 in 1 : vector<8x1xf32>, vector<8x14xf32>, vector<8x1xf32> -> vector<8x16xf32>
      %c0_45 = arith.constant 0 : index
      %c7 = arith.constant 7 : index
      %167 = vector.load %arg2[%c0_45, %c7] : memref<8x49xf32, #tpu.memory_space<vmem>>, vector<8x7xf32>
      %168 = tpu.concatenate %167, %130 in 1 : vector<8x7xf32>, vector<8x9xf32> -> vector<8x16xf32>
      %169 = vector.extract_strided_slice %168 {offsets = [0, 12], sizes = [8, 4], strides = [1, 1]} : vector<8x16xf32> to vector<8x4xf32>
      %170 = vector.extract_strided_slice %168 {offsets = [0, 0], sizes = [8, 12], strides = [1, 1]} : vector<8x16xf32> to vector<8x12xf32>
      %171 = tpu.concatenate %169, %170 in 1 : vector<8x4xf32>, vector<8x12xf32> -> vector<8x16xf32>
      %172 = vector.shape_cast %37 : vector<1x16xi1> to vector<1x16xi1>
      %173 = vector.broadcast %172 : vector<1x16xi1> to vector<8x16xi1>
      %174 = arith.select %173, %171, %168 : vector<8x16xi1>, vector<8x16xf32>
      %175 = vector.extract_strided_slice %174 {offsets = [0, 14], sizes = [8, 2], strides = [1, 1]} : vector<8x16xf32> to vector<8x2xf32>
      %176 = vector.extract_strided_slice %174 {offsets = [0, 0], sizes = [8, 14], strides = [1, 1]} : vector<8x16xf32> to vector<8x14xf32>
      %177 = tpu.concatenate %175, %176 in 1 : vector<8x2xf32>, vector<8x14xf32> -> vector<8x16xf32>
      %178 = vector.shape_cast %74 : vector<1x16xi1> to vector<1x16xi1>
      %179 = vector.broadcast %178 : vector<1x16xi1> to vector<8x16xi1>
      %180 = arith.select %179, %177, %174 : vector<8x16xi1>, vector<8x16xf32>
      %181 = vector.extract_strided_slice %180 {offsets = [0, 15], sizes = [8, 1], strides = [1, 1]} : vector<8x16xf32> to vector<8x1xf32>
      %182 = vector.extract_strided_slice %180 {offsets = [0, 0], sizes = [8, 15], strides = [1, 1]} : vector<8x16xf32> to vector<8x15xf32>
      %183 = tpu.concatenate %181, %182 in 1 : vector<8x1xf32>, vector<8x15xf32> -> vector<8x16xf32>
      %184 = vector.shape_cast %111 : vector<1x16xi1> to vector<1x16xi1>
      %185 = vector.broadcast %184 : vector<1x16xi1> to vector<8x16xi1>
      %186 = arith.select %185, %183, %180 : vector<8x16xi1>, vector<8x16xf32>
      %187 = vector.extract_strided_slice %186 {offsets = [0, 15], sizes = [8, 1], strides = [1, 1]} : vector<8x16xf32> to vector<8x1xf32>
      %188 = vector.extract_strided_slice %186 {offsets = [0, 0], sizes = [8, 15], strides = [1, 1]} : vector<8x16xf32> to vector<8x15xf32>
      %189 = tpu.concatenate %187, %188 in 1 : vector<8x1xf32>, vector<8x15xf32> -> vector<8x16xf32>
      %190 = vector.shape_cast %129 : vector<1x16xi1> to vector<1x16xi1>
      %191 = vector.broadcast %190 : vector<1x16xi1> to vector<8x16xi1>
      %192 = arith.select %191, %189, %186 : vector<8x16xi1>, vector<8x16xf32>
      %193 = vector.extract_strided_slice %192 {offsets = [0, 0], sizes = [8, 14], strides = [1, 1]} : vector<8x16xf32> to vector<8x14xf32>
      %194 = vector.extract_strided_slice %167 {offsets = [0, 0], sizes = [8, 1], strides = [1, 1]} : vector<8x7xf32> to vector<8x1xf32>
      %195 = vector.extract_strided_slice %167 {offsets = [0, 6], sizes = [8, 1], strides = [1, 1]} : vector<8x7xf32> to vector<8x1xf32>
      %196 = tpu.concatenate %194, %193, %195 in 1 : vector<8x1xf32>, vector<8x14xf32>, vector<8x1xf32> -> vector<8x16xf32>
      %c0_46 = arith.constant 0 : index
      %c14 = arith.constant 14 : index
      %197 = vector.load %arg2[%c0_46, %c14] : memref<8x49xf32, #tpu.memory_space<vmem>>, vector<8x7xf32>
      %198 = tpu.concatenate %197, %130 in 1 : vector<8x7xf32>, vector<8x9xf32> -> vector<8x16xf32>
      %199 = vector.extract_strided_slice %198 {offsets = [0, 12], sizes = [8, 4], strides = [1, 1]} : vector<8x16xf32> to vector<8x4xf32>
      %200 = vector.extract_strided_slice %198 {offsets = [0, 0], sizes = [8, 12], strides = [1, 1]} : vector<8x16xf32> to vector<8x12xf32>
      %201 = tpu.concatenate %199, %200 in 1 : vector<8x4xf32>, vector<8x12xf32> -> vector<8x16xf32>
      %202 = vector.shape_cast %37 : vector<1x16xi1> to vector<1x16xi1>
      %203 = vector.broadcast %202 : vector<1x16xi1> to vector<8x16xi1>
      %204 = arith.select %203, %201, %198 : vector<8x16xi1>, vector<8x16xf32>
      %205 = vector.extract_strided_slice %204 {offsets = [0, 14], sizes = [8, 2], strides = [1, 1]} : vector<8x16xf32> to vector<8x2xf32>
      %206 = vector.extract_strided_slice %204 {offsets = [0, 0], sizes = [8, 14], strides = [1, 1]} : vector<8x16xf32> to vector<8x14xf32>
      %207 = tpu.concatenate %205, %206 in 1 : vector<8x2xf32>, vector<8x14xf32> -> vector<8x16xf32>
      %208 = vector.shape_cast %74 : vector<1x16xi1> to vector<1x16xi1>
      %209 = vector.broadcast %208 : vector<1x16xi1> to vector<8x16xi1>
      %210 = arith.select %209, %207, %204 : vector<8x16xi1>, vector<8x16xf32>
      %211 = vector.extract_strided_slice %210 {offsets = [0, 15], sizes = [8, 1], strides = [1, 1]} : vector<8x16xf32> to vector<8x1xf32>
      %212 = vector.extract_strided_slice %210 {offsets = [0, 0], sizes = [8, 15], strides = [1, 1]} : vector<8x16xf32> to vector<8x15xf32>
      %213 = tpu.concatenate %211, %212 in 1 : vector<8x1xf32>, vector<8x15xf32> -> vector<8x16xf32>
      %214 = vector.shape_cast %111 : vector<1x16xi1> to vector<1x16xi1>
      %215 = vector.broadcast %214 : vector<1x16xi1> to vector<8x16xi1>
      %216 = arith.select %215, %213, %210 : vector<8x16xi1>, vector<8x16xf32>
      %217 = vector.extract_strided_slice %216 {offsets = [0, 15], sizes = [8, 1], strides = [1, 1]} : vector<8x16xf32> to vector<8x1xf32>
      %218 = vector.extract_strided_slice %216 {offsets = [0, 0], sizes = [8, 15], strides = [1, 1]} : vector<8x16xf32> to vector<8x15xf32>
      %219 = tpu.concatenate %217, %218 in 1 : vector<8x1xf32>, vector<8x15xf32> -> vector<8x16xf32>
      %220 = vector.shape_cast %129 : vector<1x16xi1> to vector<1x16xi1>
      %221 = vector.broadcast %220 : vector<1x16xi1> to vector<8x16xi1>
      %222 = arith.select %221, %219, %216 : vector<8x16xi1>, vector<8x16xf32>
      %223 = vector.extract_strided_slice %222 {offsets = [0, 0], sizes = [8, 14], strides = [1, 1]} : vector<8x16xf32> to vector<8x14xf32>
      %224 = vector.extract_strided_slice %197 {offsets = [0, 0], sizes = [8, 1], strides = [1, 1]} : vector<8x7xf32> to vector<8x1xf32>
      %225 = vector.extract_strided_slice %197 {offsets = [0, 6], sizes = [8, 1], strides = [1, 1]} : vector<8x7xf32> to vector<8x1xf32>
      %226 = tpu.concatenate %224, %223, %225 in 1 : vector<8x1xf32>, vector<8x14xf32>, vector<8x1xf32> -> vector<8x16xf32>
      %c0_47 = arith.constant 0 : index
      %c21 = arith.constant 21 : index
      %227 = vector.load %arg2[%c0_47, %c21] : memref<8x49xf32, #tpu.memory_space<vmem>>, vector<8x7xf32>
      %228 = tpu.concatenate %227, %130 in 1 : vector<8x7xf32>, vector<8x9xf32> -> vector<8x16xf32>
      %229 = vector.extract_strided_slice %228 {offsets = [0, 12], sizes = [8, 4], strides = [1, 1]} : vector<8x16xf32> to vector<8x4xf32>
      %230 = vector.extract_strided_slice %228 {offsets = [0, 0], sizes = [8, 12], strides = [1, 1]} : vector<8x16xf32> to vector<8x12xf32>
      %231 = tpu.concatenate %229, %230 in 1 : vector<8x4xf32>, vector<8x12xf32> -> vector<8x16xf32>
      %232 = vector.shape_cast %37 : vector<1x16xi1> to vector<1x16xi1>
      %233 = vector.broadcast %232 : vector<1x16xi1> to vector<8x16xi1>
      %234 = arith.select %233, %231, %228 : vector<8x16xi1>, vector<8x16xf32>
      %235 = vector.extract_strided_slice %234 {offsets = [0, 14], sizes = [8, 2], strides = [1, 1]} : vector<8x16xf32> to vector<8x2xf32>
      %236 = vector.extract_strided_slice %234 {offsets = [0, 0], sizes = [8, 14], strides = [1, 1]} : vector<8x16xf32> to vector<8x14xf32>
      %237 = tpu.concatenate %235, %236 in 1 : vector<8x2xf32>, vector<8x14xf32> -> vector<8x16xf32>
      %238 = vector.shape_cast %74 : vector<1x16xi1> to vector<1x16xi1>
      %239 = vector.broadcast %238 : vector<1x16xi1> to vector<8x16xi1>
      %240 = arith.select %239, %237, %234 : vector<8x16xi1>, vector<8x16xf32>
      %241 = vector.extract_strided_slice %240 {offsets = [0, 15], sizes = [8, 1], strides = [1, 1]} : vector<8x16xf32> to vector<8x1xf32>
      %242 = vector.extract_strided_slice %240 {offsets = [0, 0], sizes = [8, 15], strides = [1, 1]} : vector<8x16xf32> to vector<8x15xf32>
      %243 = tpu.concatenate %241, %242 in 1 : vector<8x1xf32>, vector<8x15xf32> -> vector<8x16xf32>
      %244 = vector.shape_cast %111 : vector<1x16xi1> to vector<1x16xi1>
      %245 = vector.broadcast %244 : vector<1x16xi1> to vector<8x16xi1>
      %246 = arith.select %245, %243, %240 : vector<8x16xi1>, vector<8x16xf32>
      %247 = vector.extract_strided_slice %246 {offsets = [0, 15], sizes = [8, 1], strides = [1, 1]} : vector<8x16xf32> to vector<8x1xf32>
      %248 = vector.extract_strided_slice %246 {offsets = [0, 0], sizes = [8, 15], strides = [1, 1]} : vector<8x16xf32> to vector<8x15xf32>
      %249 = tpu.concatenate %247, %248 in 1 : vector<8x1xf32>, vector<8x15xf32> -> vector<8x16xf32>
      %250 = vector.shape_cast %129 : vector<1x16xi1> to vector<1x16xi1>
      %251 = vector.broadcast %250 : vector<1x16xi1> to vector<8x16xi1>
      %252 = arith.select %251, %249, %246 : vector<8x16xi1>, vector<8x16xf32>
      %253 = vector.extract_strided_slice %252 {offsets = [0, 0], sizes = [8, 14], strides = [1, 1]} : vector<8x16xf32> to vector<8x14xf32>
      %254 = vector.extract_strided_slice %227 {offsets = [0, 0], sizes = [8, 1], strides = [1, 1]} : vector<8x7xf32> to vector<8x1xf32>
      %255 = vector.extract_strided_slice %227 {offsets = [0, 6], sizes = [8, 1], strides = [1, 1]} : vector<8x7xf32> to vector<8x1xf32>
      %256 = tpu.concatenate %254, %253, %255 in 1 : vector<8x1xf32>, vector<8x14xf32>, vector<8x1xf32> -> vector<8x16xf32>
      %257 = tpu.concatenate %166, %166, %166, %196, %196, %226, %226, %256 in 1 : vector<8x16xf32>, vector<8x16xf32>, vector<8x16xf32>, vector<8x16xf32>, vector<8x16xf32>, vector<8x16xf32>, vector<8x16xf32>, vector<8x16xf32> -> vector<8x128xf32>
      %c0_48 = arith.constant 0 : index
      %c0_49 = arith.constant 0 : index
      %258 = vector.load %arg3[%c0_48, %c0_49] : memref<8x128xf32, #tpu.memory_space<vmem>>, vector<8x128xf32>
      tpu.vector_store %arg3[%c0_48, %c0_49], %257 {strides = array<i32>} : memref<8x128xf32, #tpu.memory_space<vmem>>, vector<8x128xf32>,
    } else {
    }
    %c1_i32_42 = arith.constant 1 : i32
    %134 = arith.cmpi eq, %arg1, %c1_i32_42 : i32
    %135 = arith.extui %134 : i1 to i32
    %c0_i32_43 = arith.constant 0 : i32
    %136 = arith.cmpi ne, %135, %c0_i32_43 : i32
    scf.if %136 {
      %c0 = arith.constant 0 : index
      %c21 = arith.constant 21 : index
      %137 = vector.load %arg2[%c0, %c21] : memref<8x49xf32, #tpu.memory_space<vmem>>, vector<8x7xf32>
      %138 = tpu.concatenate %137, %130 in 1 : vector<8x7xf32>, vector<8x9xf32> -> vector<8x16xf32>
      %139 = vector.extract_strided_slice %138 {offsets = [0, 12], sizes = [8, 4], strides = [1, 1]} : vector<8x16xf32> to vector<8x4xf32>
      %140 = vector.extract_strided_slice %138 {offsets = [0, 0], sizes = [8, 12], strides = [1, 1]} : vector<8x16xf32> to vector<8x12xf32>
      %141 = tpu.concatenate %139, %140 in 1 : vector<8x4xf32>, vector<8x12xf32> -> vector<8x16xf32>
      %142 = vector.shape_cast %37 : vector<1x16xi1> to vector<1x16xi1>
      %143 = vector.broadcast %142 : vector<1x16xi1> to vector<8x16xi1>
      %144 = arith.select %143, %141, %138 : vector<8x16xi1>, vector<8x16xf32>
      %145 = vector.extract_strided_slice %144 {offsets = [0, 14], sizes = [8, 2], strides = [1, 1]} : vector<8x16xf32> to vector<8x2xf32>
      %146 = vector.extract_strided_slice %144 {offsets = [0, 0], sizes = [8, 14], strides = [1, 1]} : vector<8x16xf32> to vector<8x14xf32>
      %147 = tpu.concatenate %145, %146 in 1 : vector<8x2xf32>, vector<8x14xf32> -> vector<8x16xf32>
      %148 = vector.shape_cast %74 : vector<1x16xi1> to vector<1x16xi1>
      %149 = vector.broadcast %148 : vector<1x16xi1> to vector<8x16xi1>
      %150 = arith.select %149, %147, %144 : vector<8x16xi1>, vector<8x16xf32>
      %151 = vector.extract_strided_slice %150 {offsets = [0, 15], sizes = [8, 1], strides = [1, 1]} : vector<8x16xf32> to vector<8x1xf32>
      %152 = vector.extract_strided_slice %150 {offsets = [0, 0], sizes = [8, 15], strides = [1, 1]} : vector<8x16xf32> to vector<8x15xf32>
      %153 = tpu.concatenate %151, %152 in 1 : vector<8x1xf32>, vector<8x15xf32> -> vector<8x16xf32>
      %154 = vector.shape_cast %111 : vector<1x16xi1> to vector<1x16xi1>
      %155 = vector.broadcast %154 : vector<1x16xi1> to vector<8x16xi1>
      %156 = arith.select %155, %153, %150 : vector<8x16xi1>, vector<8x16xf32>
      %157 = vector.extract_strided_slice %156 {offsets = [0, 15], sizes = [8, 1], strides = [1, 1]} : vector<8x16xf32> to vector<8x1xf32>
      %158 = vector.extract_strided_slice %156 {offsets = [0, 0], sizes = [8, 15], strides = [1, 1]} : vector<8x16xf32> to vector<8x15xf32>
      %159 = tpu.concatenate %157, %158 in 1 : vector<8x1xf32>, vector<8x15xf32> -> vector<8x16xf32>
      %160 = vector.shape_cast %129 : vector<1x16xi1> to vector<1x16xi1>
      %161 = vector.broadcast %160 : vector<1x16xi1> to vector<8x16xi1>
      %162 = arith.select %161, %159, %156 : vector<8x16xi1>, vector<8x16xf32>
      %163 = vector.extract_strided_slice %162 {offsets = [0, 0], sizes = [8, 14], strides = [1, 1]} : vector<8x16xf32> to vector<8x14xf32>
      %164 = vector.extract_strided_slice %137 {offsets = [0, 0], sizes = [8, 1], strides = [1, 1]} : vector<8x7xf32> to vector<8x1xf32>
      %165 = vector.extract_strided_slice %137 {offsets = [0, 6], sizes = [8, 1], strides = [1, 1]} : vector<8x7xf32> to vector<8x1xf32>
      %166 = tpu.concatenate %164, %163, %165 in 1 : vector<8x1xf32>, vector<8x14xf32>, vector<8x1xf32> -> vector<8x16xf32>
      %c0_44 = arith.constant 0 : index
      %c28 = arith.constant 28 : index
      %167 = vector.load %arg2[%c0_44, %c28] : memref<8x49xf32, #tpu.memory_space<vmem>>, vector<8x7xf32>
      %168 = tpu.concatenate %167, %130 in 1 : vector<8x7xf32>, vector<8x9xf32> -> vector<8x16xf32>
      %169 = vector.extract_strided_slice %168 {offsets = [0, 12], sizes = [8, 4], strides = [1, 1]} : vector<8x16xf32> to vector<8x4xf32>
      %170 = vector.extract_strided_slice %168 {offsets = [0, 0], sizes = [8, 12], strides = [1, 1]} : vector<8x16xf32> to vector<8x12xf32>
      %171 = tpu.concatenate %169, %170 in 1 : vector<8x4xf32>, vector<8x12xf32> -> vector<8x16xf32>
      %172 = vector.shape_cast %37 : vector<1x16xi1> to vector<1x16xi1>
      %173 = vector.broadcast %172 : vector<1x16xi1> to vector<8x16xi1>
      %174 = arith.select %173, %171, %168 : vector<8x16xi1>, vector<8x16xf32>
      %175 = vector.extract_strided_slice %174 {offsets = [0, 14], sizes = [8, 2], strides = [1, 1]} : vector<8x16xf32> to vector<8x2xf32>
      %176 = vector.extract_strided_slice %174 {offsets = [0, 0], sizes = [8, 14], strides = [1, 1]} : vector<8x16xf32> to vector<8x14xf32>
      %177 = tpu.concatenate %175, %176 in 1 : vector<8x2xf32>, vector<8x14xf32> -> vector<8x16xf32>
      %178 = vector.shape_cast %74 : vector<1x16xi1> to vector<1x16xi1>
      %179 = vector.broadcast %178 : vector<1x16xi1> to vector<8x16xi1>
      %180 = arith.select %179, %177, %174 : vector<8x16xi1>, vector<8x16xf32>
      %181 = vector.extract_strided_slice %180 {offsets = [0, 15], sizes = [8, 1], strides = [1, 1]} : vector<8x16xf32> to vector<8x1xf32>
      %182 = vector.extract_strided_slice %180 {offsets = [0, 0], sizes = [8, 15], strides = [1, 1]} : vector<8x16xf32> to vector<8x15xf32>
      %183 = tpu.concatenate %181, %182 in 1 : vector<8x1xf32>, vector<8x15xf32> -> vector<8x16xf32>
      %184 = vector.shape_cast %111 : vector<1x16xi1> to vector<1x16xi1>
      %185 = vector.broadcast %184 : vector<1x16xi1> to vector<8x16xi1>
      %186 = arith.select %185, %183, %180 : vector<8x16xi1>, vector<8x16xf32>
      %187 = vector.extract_strided_slice %186 {offsets = [0, 15], sizes = [8, 1], strides = [1, 1]} : vector<8x16xf32> to vector<8x1xf32>
      %188 = vector.extract_strided_slice %186 {offsets = [0, 0], sizes = [8, 15], strides = [1, 1]} : vector<8x16xf32> to vector<8x15xf32>
      %189 = tpu.concatenate %187, %188 in 1 : vector<8x1xf32>, vector<8x15xf32> -> vector<8x16xf32>
      %190 = vector.shape_cast %129 : vector<1x16xi1> to vector<1x16xi1>
      %191 = vector.broadcast %190 : vector<1x16xi1> to vector<8x16xi1>
      %192 = arith.select %191, %189, %186 : vector<8x16xi1>, vector<8x16xf32>
      %193 = vector.extract_strided_slice %192 {offsets = [0, 0], sizes = [8, 14], strides = [1, 1]} : vector<8x16xf32> to vector<8x14xf32>
      %194 = vector.extract_strided_slice %167 {offsets = [0, 0], sizes = [8, 1], strides = [1, 1]} : vector<8x7xf32> to vector<8x1xf32>
      %195 = vector.extract_strided_slice %167 {offsets = [0, 6], sizes = [8, 1], strides = [1, 1]} : vector<8x7xf32> to vector<8x1xf32>
      %196 = tpu.concatenate %194, %193, %195 in 1 : vector<8x1xf32>, vector<8x14xf32>, vector<8x1xf32> -> vector<8x16xf32>
      %c0_45 = arith.constant 0 : index
      %c35 = arith.constant 35 : index
      %197 = vector.load %arg2[%c0_45, %c35] : memref<8x49xf32, #tpu.memory_space<vmem>>, vector<8x7xf32>
      %198 = tpu.concatenate %197, %130 in 1 : vector<8x7xf32>, vector<8x9xf32> -> vector<8x16xf32>
      %199 = vector.extract_strided_slice %198 {offsets = [0, 12], sizes = [8, 4], strides = [1, 1]} : vector<8x16xf32> to vector<8x4xf32>
      %200 = vector.extract_strided_slice %198 {offsets = [0, 0], sizes = [8, 12], strides = [1, 1]} : vector<8x16xf32> to vector<8x12xf32>
      %201 = tpu.concatenate %199, %200 in 1 : vector<8x4xf32>, vector<8x12xf32> -> vector<8x16xf32>
      %202 = vector.shape_cast %37 : vector<1x16xi1> to vector<1x16xi1>
      %203 = vector.broadcast %202 : vector<1x16xi1> to vector<8x16xi1>
      %204 = arith.select %203, %201, %198 : vector<8x16xi1>, vector<8x16xf32>
      %205 = vector.extract_strided_slice %204 {offsets = [0, 14], sizes = [8, 2], strides = [1, 1]} : vector<8x16xf32> to vector<8x2xf32>
      %206 = vector.extract_strided_slice %204 {offsets = [0, 0], sizes = [8, 14], strides = [1, 1]} : vector<8x16xf32> to vector<8x14xf32>
      %207 = tpu.concatenate %205, %206 in 1 : vector<8x2xf32>, vector<8x14xf32> -> vector<8x16xf32>
      %208 = vector.shape_cast %74 : vector<1x16xi1> to vector<1x16xi1>
      %209 = vector.broadcast %208 : vector<1x16xi1> to vector<8x16xi1>
      %210 = arith.select %209, %207, %204 : vector<8x16xi1>, vector<8x16xf32>
      %211 = vector.extract_strided_slice %210 {offsets = [0, 15], sizes = [8, 1], strides = [1, 1]} : vector<8x16xf32> to vector<8x1xf32>
      %212 = vector.extract_strided_slice %210 {offsets = [0, 0], sizes = [8, 15], strides = [1, 1]} : vector<8x16xf32> to vector<8x15xf32>
      %213 = tpu.concatenate %211, %212 in 1 : vector<8x1xf32>, vector<8x15xf32> -> vector<8x16xf32>
      %214 = vector.shape_cast %111 : vector<1x16xi1> to vector<1x16xi1>
      %215 = vector.broadcast %214 : vector<1x16xi1> to vector<8x16xi1>
      %216 = arith.select %215, %213, %210 : vector<8x16xi1>, vector<8x16xf32>
      %217 = vector.extract_strided_slice %216 {offsets = [0, 15], sizes = [8, 1], strides = [1, 1]} : vector<8x16xf32> to vector<8x1xf32>
      %218 = vector.extract_strided_slice %216 {offsets = [0, 0], sizes = [8, 15], strides = [1, 1]} : vector<8x16xf32> to vector<8x15xf32>
      %219 = tpu.concatenate %217, %218 in 1 : vector<8x1xf32>, vector<8x15xf32> -> vector<8x16xf32>
      %220 = vector.shape_cast %129 : vector<1x16xi1> to vector<1x16xi1>
      %221 = vector.broadcast %220 : vector<1x16xi1> to vector<8x16xi1>
      %222 = arith.select %221, %219, %216 : vector<8x16xi1>, vector<8x16xf32>
      %223 = vector.extract_strided_slice %222 {offsets = [0, 0], sizes = [8, 14], strides = [1, 1]} : vector<8x16xf32> to vector<8x14xf32>
      %224 = vector.extract_strided_slice %197 {offsets = [0, 0], sizes = [8, 1], strides = [1, 1]} : vector<8x7xf32> to vector<8x1xf32>
      %225 = vector.extract_strided_slice %197 {offsets = [0, 6], sizes = [8, 1], strides = [1, 1]} : vector<8x7xf32> to vector<8x1xf32>
      %226 = tpu.concatenate %224, %223, %225 in 1 : vector<8x1xf32>, vector<8x14xf32>, vector<8x1xf32> -> vector<8x16xf32>
      %c0_46 = arith.constant 0 : index
      %c42 = arith.constant 42 : index
      %227 = vector.load %arg2[%c0_46, %c42] : memref<8x49xf32, #tpu.memory_space<vmem>>, vector<8x7xf32>
      %228 = tpu.concatenate %227, %130 in 1 : vector<8x7xf32>, vector<8x9xf32> -> vector<8x16xf32>
      %229 = vector.extract_strided_slice %228 {offsets = [0, 12], sizes = [8, 4], strides = [1, 1]} : vector<8x16xf32> to vector<8x4xf32>
      %230 = vector.extract_strided_slice %228 {offsets = [0, 0], sizes = [8, 12], strides = [1, 1]} : vector<8x16xf32> to vector<8x12xf32>
      %231 = tpu.concatenate %229, %230 in 1 : vector<8x4xf32>, vector<8x12xf32> -> vector<8x16xf32>
      %232 = vector.shape_cast %37 : vector<1x16xi1> to vector<1x16xi1>
      %233 = vector.broadcast %232 : vector<1x16xi1> to vector<8x16xi1>
      %234 = arith.select %233, %231, %228 : vector<8x16xi1>, vector<8x16xf32>
      %235 = vector.extract_strided_slice %234 {offsets = [0, 14], sizes = [8, 2], strides = [1, 1]} : vector<8x16xf32> to vector<8x2xf32>
      %236 = vector.extract_strided_slice %234 {offsets = [0, 0], sizes = [8, 14], strides = [1, 1]} : vector<8x16xf32> to vector<8x14xf32>
      %237 = tpu.concatenate %235, %236 in 1 : vector<8x2xf32>, vector<8x14xf32> -> vector<8x16xf32>
      %238 = vector.shape_cast %74 : vector<1x16xi1> to vector<1x16xi1>
      %239 = vector.broadcast %238 : vector<1x16xi1> to vector<8x16xi1>
      %240 = arith.select %239, %237, %234 : vector<8x16xi1>, vector<8x16xf32>
      %241 = vector.extract_strided_slice %240 {offsets = [0, 15], sizes = [8, 1], strides = [1, 1]} : vector<8x16xf32> to vector<8x1xf32>
      %242 = vector.extract_strided_slice %240 {offsets = [0, 0], sizes = [8, 15], strides = [1, 1]} : vector<8x16xf32> to vector<8x15xf32>
      %243 = tpu.concatenate %241, %242 in 1 : vector<8x1xf32>, vector<8x15xf32> -> vector<8x16xf32>
      %244 = vector.shape_cast %111 : vector<1x16xi1> to vector<1x16xi1>
      %245 = vector.broadcast %244 : vector<1x16xi1> to vector<8x16xi1>
      %246 = arith.select %245, %243, %240 : vector<8x16xi1>, vector<8x16xf32>
      %247 = vector.extract_strided_slice %246 {offsets = [0, 15], sizes = [8, 1], strides = [1, 1]} : vector<8x16xf32> to vector<8x1xf32>
      %248 = vector.extract_strided_slice %246 {offsets = [0, 0], sizes = [8, 15], strides = [1, 1]} : vector<8x16xf32> to vector<8x15xf32>
      %249 = tpu.concatenate %247, %248 in 1 : vector<8x1xf32>, vector<8x15xf32> -> vector<8x16xf32>
      %250 = vector.shape_cast %129 : vector<1x16xi1> to vector<1x16xi1>
      %251 = vector.broadcast %250 : vector<1x16xi1> to vector<8x16xi1>
      %252 = arith.select %251, %249, %246 : vector<8x16xi1>, vector<8x16xf32>
      %253 = vector.extract_strided_slice %252 {offsets = [0, 0], sizes = [8, 14], strides = [1, 1]} : vector<8x16xf32> to vector<8x14xf32>
      %254 = vector.extract_strided_slice %227 {offsets = [0, 0], sizes = [8, 1], strides = [1, 1]} : vector<8x7xf32> to vector<8x1xf32>
      %255 = vector.extract_strided_slice %227 {offsets = [0, 6], sizes = [8, 1], strides = [1, 1]} : vector<8x7xf32> to vector<8x1xf32>
      %256 = tpu.concatenate %254, %253, %255 in 1 : vector<8x1xf32>, vector<8x14xf32>, vector<8x1xf32> -> vector<8x16xf32>
      %257 = tpu.concatenate %166, %196, %196, %226, %226, %256, %256, %256 in 1 : vector<8x16xf32>, vector<8x16xf32>, vector<8x16xf32>, vector<8x16xf32>, vector<8x16xf32>, vector<8x16xf32>, vector<8x16xf32>, vector<8x16xf32> -> vector<8x128xf32>
      %c0_47 = arith.constant 0 : index
      %c0_48 = arith.constant 0 : index
      %258 = vector.load %arg3[%c0_47, %c0_48] : memref<8x128xf32, #tpu.memory_space<vmem>>, vector<8x128xf32>
      tpu.vector_store %arg3[%c0_47, %c0_48], %257 {strides = array<i32>} : memref<8x128xf32, #tpu.memory_space<vmem>>, vector<8x128xf32>,
    } else {
    }
    return
  }
  func.func @transform_0(%arg0: i32, %arg1: i32) -> (i32, i32) {
    %c0_i32 = arith.constant 0 : i32
    %c0_i32_0 = arith.constant 0 : i32
    return %arg0, %c0_i32 : i32, i32
  }
  func.func @transform_1(%arg0: i32, %arg1: i32) -> (i32, i32) {
    %c0_i32 = arith.constant 0 : i32
    return %arg0, %arg1 : i32, i32
  }
}

</mosaic_0001>

<llo_original>
// kernel: tpu_custom_call.1
$region0: #{tpu_custom_call.1}
  #allocation0 [shape = 'u32[]', space=smem, size = 0x4, offset = 0x4, fixed_abs, tag = 'smem constant byte address 0x4 - core index']
  #allocation1 [shape = 'u32[144,128]{1,0:T(1,128)}', space=vmem, size = 0x12000, scoped, tag = 'internal scratch']
  %s0 = inlined_call_operand.hbm [shape: f32[8,49], index: 0, kind: input, shape index: {}]
  %s1 = inlined_call_operand.hbm [shape: f32[8,256], index: 1, kind: output, shape index: {}]
  %s2 = sld [smem:[#allocation0]]
  $region49: #{tpu_custom_call.1} parent=0
    _
  %s4 = ssub.s32 1, %s2
  %s5 = scalar_select 0, %s4, %s2
  $region1: #{tpu_custom_call.1} parent=0
    #allocation2 [shape = 'u8[4096]{0}', space=vmem, size = 0x1000, scoped, tag = 'input window, operand 0, single buffered']
    #allocation3 [shape = 's32[2]{0}', space=sflag, size = 0x8, scoped, tag = 'scoped memory for tpu_custom_call.1']
    #allocation4 [shape = 's32[2]{0}', space=sflag, size = 0x8, scoped, tag = 'scoped memory for tpu_custom_call.1']
    #allocation5 [shape = 'u8[8192]{0}', space=vmem, size = 0x2000, scoped, tag = 'output window, operand 0']
    %6 = vsyncpa [#allocation3], 0
    %7 = vsyncpa [#allocation4], 0
    %s8 = scalar_lea.sflag [#allocation4], 1
    %9 = vsyncpa %s8, 0
    loop: start=0, step=1, limit=4
    $region2: #{tpu_custom_call.1} parent=1 // loop_pre_header
      _
    $region3: #{tpu_custom_call.1} parent=1 // loop_header
      %s11 = sphi 0, %s15
      %p12 = scmp.ge.s32.totalorder %s11, 4
      %s18 = sphi 0, %s30
      %s19 = sphi 0, %s26
      %s20 = sphi 0, %s18
      %s21 = sphi 0, %s19
      %s22 = sphi 0, %s20
      %s23 = sphi 0, %s21
      %s33 = sphi 0, %s35
      %s36 = sphi 0, %s33
      %s37 = sphi 0, %s36
      %s53 = sphi 0, %s37
      %s61 = sphi 0, %s63
      %s64 = sphi 0, %s61
      %s65 = sphi 0, %s64
      %s81 = sphi 0, %s65
    $region4: #{tpu_custom_call.1} parent=1 // loop_header_branch
      %14 = sbr.rel (%p12) target = $region8
    $region5: #{tpu_custom_call.1} parent=1 // loop_body
      %s16 = ssub.s32 %s11, 1
      %s17 = ssub.s32 %s11, 2
      %s24 = sadd.s32 1, %s19
      %p25 = scmp.ge.s32.totalorder %s24, 2
      %s26 = scalar_select %p25, 0, %s24
      %s27 = sadd.s32 1, %s18
      %s28 = scalar_select %p25, %s27, %s18
      %p29 = scmp.ge.s32.totalorder %s28, 1
      %s30 = scalar_select %p29, 0, %s28
      %s31 = ssub.s32 %s18, %s30
      %p32 = scmp.eq.s32.totalorder %s31, 0
      %s34 = sadd.s32 %s33, 1
      %s35 = scalar_select %p32, %s33, %s34
      %p38 = pneg %p32
      %p39 = scmp.eq.s32.totalorder %s11, 1
      %p40 = por %p38, %p39
      %p41 = scmp.ne.s32.totalorder %s33, %s36
      %p42 = scmp.eq.s32.totalorder %s11, 0
      %p43 = por %p41, %p42
      %p44 = scmp.ne.s32.totalorder %s33, %s36
      %p45 = scmp.eq.s32.totalorder %s16, 1
      %p46 = por %p44, %p45
      %p47 = scmp.ne.s32.totalorder %s36, %s37
      %p48 = scmp.eq.s32.totalorder %s16, 0
      %p49 = por %p47, %p48
      %p50 = scmp.ne.s32.totalorder %s36, %s37
      %p51 = scmp.eq.s32.totalorder %s17, 1
      %p52 = por %p50, %p51
      %p54 = scmp.ne.s32.totalorder %s37, %s53
      %p55 = scmp.eq.s32.totalorder %s17, 0
      %p56 = por %p54, %p55
      %s57 = ssub.s32 %s18, %s30
      %s58 = ssub.s32 %s19, %s26
      %s59 = sor.u32 %s57, %s58
      %p60 = scmp.eq.s32.totalorder %s59, 0
      %s62 = sadd.s32 %s61, 1
      %s63 = scalar_select %p60, %s61, %s62
      %p66 = pneg %p60
      %p67 = scmp.eq.s32.totalorder %s11, 1
      %p68 = por %p66, %p67
      %p69 = scmp.ne.s32.totalorder %s61, %s64
      %p70 = scmp.eq.s32.totalorder %s11, 0
      %p71 = por %p69, %p70
      %p72 = scmp.ne.s32.totalorder %s61, %s64
      %p73 = scmp.eq.s32.totalorder %s16, 1
      %p74 = por %p72, %p73
      %p75 = scmp.ne.s32.totalorder %s64, %s65
      %p76 = scmp.eq.s32.totalorder %s16, 0
      %p77 = por %p75, %p76
      %p78 = scmp.ne.s32.totalorder %s64, %s65
      %p79 = scmp.eq.s32.totalorder %s17, 1
      %p80 = por %p78, %p79
      %p82 = scmp.ne.s32.totalorder %s65, %s81
      %p83 = scmp.eq.s32.totalorder %s17, 0
      %p84 = por %p82, %p83
      %p85 = scmp.le.s32.totalorder 1, %s11
      %p86 = scmp.lt.s32.totalorder %s11, 3
      %p87 = pnand %p85, %p86
      %p88 = pneg %p87
      // Predicated region
      $region9: #{tpu_custom_call.1} parent=5 // pred_check
        _
      $region10: #{tpu_custom_call.1} parent=5 // pred_check_branch
        %90 = sbr.rel (%p87) target = $region12
      $region11: #{tpu_custom_call.1} parent=5 // pred_region
        %s91 = ssub.s32 %s11, 1
        // Predicated region
        $region13: #{tpu_custom_call.1} parent=11 // pred_check
          %p92 = pneg %p49
        $region14: #{tpu_custom_call.1} parent=11 // pred_check_branch
          %94 = sbr.rel (%p92) target = $region16
        $region15: #{tpu_custom_call.1} parent=11 // pred_region
          %s96 = ssub.s32 128, 128
          %97 = vsyncadd [#allocation3], %s96
          %s98 = smul.addr %s20, 128
          %s99 = scalar_lea.hbm %s0, %s98
          %s101 = sshll.u32 [#allocation2], 4
          %s102 = int_to_ptr.vmem [resolvable:$true] %s101
          %104 = dma.hbm_to_vmem [thread:$0]  %s99, 128, %s102, [#allocation3]
        $region16: #{tpu_custom_call.1} parent=11 // pred_fallthru
          _
      $region12: #{tpu_custom_call.1} parent=5 // pred_fallthru
        _
      %p105 = scmp.lt.s32.totalorder %s11, 2
      // Predicated region
      $region17: #{tpu_custom_call.1} parent=5 // pred_check
        %p106 = pneg %p105
      $region18: #{tpu_custom_call.1} parent=5 // pred_check_branch
        %108 = sbr.rel (%p106) target = $region20
      $region19: #{tpu_custom_call.1} parent=5 // pred_region
        _
      $region20: #{tpu_custom_call.1} parent=5 // pred_fallthru
        _
      %p109 = scmp.le.s32.totalorder 1, %s11
      %p110 = scmp.lt.s32.totalorder %s11, 3
      %p111 = pnand %p109, %p110
      %p112 = pneg %p111
      // Predicated region
      $region21: #{tpu_custom_call.1} parent=5 // pred_check
        _
      $region22: #{tpu_custom_call.1} parent=5 // pred_check_branch
        %114 = sbr.rel (%p111) target = $region24
      $region23: #{tpu_custom_call.1} parent=5 // pred_region
        %s115 = ssub.s32 %s11, 1
        // Predicated region
        $region25: #{tpu_custom_call.1} parent=23 // pred_check
          %p116 = pneg %p49
        $region26: #{tpu_custom_call.1} parent=23 // pred_check_branch
          %118 = sbr.rel (%p116) target = $region28
        $region27: #{tpu_custom_call.1} parent=23 // pred_region
          %119 = dma.done [#allocation3], 128
        $region28: #{tpu_custom_call.1} parent=23 // pred_fallthru
          _
        %p120 = pneg %p49
        %p121 = pneg %p46
        %p122 = pneg %p77
        %p123 = pneg %p74
        %s124 = sand.u32 %s64, 1
        %s125 = scalar_lea.sflag [#allocation4], %s124
        %s126 = sand.u32 %s64, 1
        %s127 = smul.addr %s126, 8
        %s128 = scalar_lea.vmem [#allocation5], %s127
        %v129 = vlaneseq
        %v130 = vand.u32 %v129, 127
        %vm131 = vcmp.lt.s32.totalorder %v130, 0
        %v132 = vsub.s32 0, %v130
        %v133 = vsel %vm131, %v132, %v130
        %v134 = vshrl.u32 %v133, 4
        %v135 = vand.u32 %v133, 15
        %v136 = vsub.s32 0, %v135
        %v137 = vsel %vm131, %v136, %v135
        %vm138 = vcmp.ne.s32.totalorder %v137, 0
        %vm139 = vcmp.lt.s32.totalorder %v137, 0
        %vm140 = vmand %vm139, %vm138
        %v141 = vadd.s32 %v137, 16
        %v142 = vsel %vm140, %v141, %v137
        %vm143 = vcmp.ge.s32.totalorder %v142, 8
        %vm144 = vcmp.lt.s32.totalorder %v142, 12
        %vm145 = vmand %vm143, %vm144
        %vm146 = vcmp.lt.s32.totalorder %v130, 0
        %v147 = vsub.s32 0, %v130
        %v148 = vsel %vm146, %v147, %v130
        %v149 = vshrl.u32 %v148, 3
        %v150 = vand.u32 %v148, 7
        %v151 = vsub.s32 0, %v150
        %v152 = vsel %vm146, %v151, %v150
        %vm153 = vcmp.ne.s32.totalorder %v152, 0
        %vm154 = vcmp.lt.s32.totalorder %v152, 0
        %vm155 = vmand %vm154, %vm153
        %v156 = vadd.s32 %v152, 8
        %v157 = vsel %vm155, %v156, %v152
        %vm158 = vcmp.ge.s32.totalorder %v157, 4
        %vm159 = vcmp.lt.s32.totalorder %v157, 6
        %vm160 = vmand %vm158, %vm159
        %vm161 = vcmp.lt.s32.totalorder %v130, 0
        %v162 = vsub.s32 0, %v130
        %v163 = vsel %vm161, %v162, %v130
        %v164 = vshrl.u32 %v163, 2
        %v165 = vand.u32 %v163, 3
        %v166 = vsub.s32 0, %v165
        %v167 = vsel %vm161, %v166, %v165
        %vm168 = vcmp.ne.s32.totalorder %v167, 0
        %vm169 = vcmp.lt.s32.totalorder %v167, 0
        %vm170 = vmand %vm169, %vm168
        %v171 = vadd.s32 %v167, 4
        %v172 = vsel %vm170, %v171, %v167
        %vm173 = vcmp.ge.s32.totalorder %v172, 2
        %vm174 = vcmp.lt.s32.totalorder %v172, 3
        %vm175 = vmand %vm173, %vm174
        %vm176 = vcmp.lt.s32.totalorder %v130, 0
        %v177 = vsub.s32 0, %v130
        %v178 = vsel %vm176, %v177, %v130
        %v179 = vshrl.u32 %v178, 1
        %v180 = vand.u32 %v178, 1
        %v181 = vsub.s32 0, %v180
        %v182 = vsel %vm176, %v181, %v180
        %vm183 = vcmp.ne.s32.totalorder %v182, 0
        %vm184 = vcmp.lt.s32.totalorder %v182, 0
        %vm185 = vmand %vm184, %vm183
        %v186 = vadd.s32 %v182, 2
        %v187 = vsel %vm185, %v186, %v182
        %vm188 = vcmp.eq.s32.totalorder %v187, 1
        %p189 = scmp.eq.s32.totalorder %s21, 0
        // Predicated region
        $region29: #{tpu_custom_call.1} parent=23 // pred_check
          %p190 = pneg %p189
        $region30: #{tpu_custom_call.1} parent=23 // pred_check_branch
          %192 = sbr.rel (%p190) target = $region32
        $region31: #{tpu_custom_call.1} parent=23 // pred_region
          %v193 = vld [vmem:[#allocation2] sm:$0xff]
          %vm194 = vcmask 56320
          %v195 = vsel %vm194, %v193, 0.0
          %197 = vrot.lane.b32.xlu0 %v195, 116
          %v198 = vpop.permute.xlu0 %197
          %200 = vrot.lane.b32.xlu0 %v195, 4
          %v201 = vpop.permute.xlu0 %200
          %vm203 = vcmask 31744
          %v204 = vsel %vm203, %v198, %v201
          %v205 = vsel %vm145, 1, 0
          %vm206 = vcmp.eq.s32.totalorder %v205, 1
          %v207 = vsel %vm206, %v204, %v195
          %209 = vrot.lane.b32.xlu0 %v207, 114
          %v210 = vpop.permute.xlu0 %209
          %212 = vrot.lane.b32.xlu0 %v207, 2
          %v213 = vpop.permute.xlu0 %212
          %vm215 = vcmask 15360
          %v216 = vsel %vm215, %v210, %v213
          %v217 = vsel %vm160, 1, 0
          %vm218 = vcmp.eq.s32.totalorder %v217, 1
          %v219 = vsel %vm218, %v216, %v207
          %221 = vrot.lane.b32.xlu0 %v219, 113
          %v222 = vpop.permute.xlu0 %221
          %224 = vrot.lane.b32.xlu0 %v219, 1
          %v225 = vpop.permute.xlu0 %224
          %vm227 = vcmask 7168
          %v228 = vsel %vm227, %v222, %v225
          %v229 = vsel %vm175, 1, 0
          %vm230 = vcmp.eq.s32.totalorder %v229, 1
          %v231 = vsel %vm230, %v228, %v219
          %233 = vrot.lane.b32.xlu0 %v231, 113
          %v234 = vpop.permute.xlu0 %233
          %236 = vrot.lane.b32.xlu0 %v231, 1
          %v237 = vpop.permute.xlu0 %236
          %v239 = vsel %vm227, %v234, %v237
          %v240 = vsel %vm188, 1, 0
          %vm241 = vcmp.eq.s32.totalorder %v240, 1
          %v242 = vsel %vm241, %v239, %v231
          %244 = vrot.lane.b32.xlu0 %v242, 1
          %v245 = vpop.permute.xlu0 %244
          %248 = vrot.lane.b32.xlu0 %v193, 9
          %v249 = vpop.permute.xlu0 %248
          %v251 = vsel %vm227, %v193, %v245
          %vm252 = vcmask 121856
          %v253 = vsel %vm252, %v251, %v249
          %254 = vrot.lane.b32.xlu0 %v193, 121
          %v255 = vpop.permute.xlu0 %254
          %v257 = vsel %vm194, %v255, 0.0
          %259 = vrot.lane.b32.xlu0 %v257, 116
          %v260 = vpop.permute.xlu0 %259
          %262 = vrot.lane.b32.xlu0 %v257, 4
          %v263 = vpop.permute.xlu0 %262
          %v265 = vsel %vm203, %v260, %v263
          %v266 = vsel %vm206, %v265, %v257
          %268 = vrot.lane.b32.xlu0 %v266, 114
          %v269 = vpop.permute.xlu0 %268
          %271 = vrot.lane.b32.xlu0 %v266, 2
          %v272 = vpop.permute.xlu0 %271
          %v274 = vsel %vm215, %v269, %v272
          %v275 = vsel %vm218, %v274, %v266
          %277 = vrot.lane.b32.xlu0 %v275, 113
          %v278 = vpop.permute.xlu0 %277
          %280 = vrot.lane.b32.xlu0 %v275, 1
          %v281 = vpop.permute.xlu0 %280
          %v283 = vsel %vm227, %v278, %v281
          %v284 = vsel %vm230, %v283, %v275
          %286 = vrot.lane.b32.xlu0 %v284, 113
          %v287 = vpop.permute.xlu0 %286
          %289 = vrot.lane.b32.xlu0 %v284, 1
          %v290 = vpop.permute.xlu0 %289
          %v292 = vsel %vm227, %v287, %v290
          %v293 = vsel %vm241, %v292, %v284
          %295 = vrot.lane.b32.xlu0 %v293, 1
          %v296 = vpop.permute.xlu0 %295
          %298 = vrot.lane.b32.xlu0 %v193, 2
          %v299 = vpop.permute.xlu0 %298
          %v301 = vsel %vm227, %v255, %v296
          %v302 = vsel %vm252, %v301, %v299
          %303 = vrot.lane.b32.xlu0 %v193, 114
          %v304 = vpop.permute.xlu0 %303
          %v306 = vsel %vm194, %v304, 0.0
          %308 = vrot.lane.b32.xlu0 %v306, 116
          %v309 = vpop.permute.xlu0 %308
          %311 = vrot.lane.b32.xlu0 %v306, 4
          %v312 = vpop.permute.xlu0 %311
          %v314 = vsel %vm203, %v309, %v312
          %v315 = vsel %vm206, %v314, %v306
          %317 = vrot.lane.b32.xlu0 %v315, 114
          %v318 = vpop.permute.xlu0 %317
          %320 = vrot.lane.b32.xlu0 %v315, 2
          %v321 = vpop.permute.xlu0 %320
          %v323 = vsel %vm215, %v318, %v321
          %v324 = vsel %vm218, %v323, %v315
          %326 = vrot.lane.b32.xlu0 %v324, 113
          %v327 = vpop.permute.xlu0 %326
          %329 = vrot.lane.b32.xlu0 %v324, 1
          %v330 = vpop.permute.xlu0 %329
          %v332 = vsel %vm227, %v327, %v330
          %v333 = vsel %vm230, %v332, %v324
          %335 = vrot.lane.b32.xlu0 %v333, 113
          %v336 = vpop.permute.xlu0 %335
          %338 = vrot.lane.b32.xlu0 %v333, 1
          %v339 = vpop.permute.xlu0 %338
          %v341 = vsel %vm227, %v336, %v339
          %v342 = vsel %vm241, %v341, %v333
          %344 = vrot.lane.b32.xlu0 %v342, 1
          %v345 = vpop.permute.xlu0 %344
          %347 = vrot.lane.b32.xlu0 %v193, 123
          %v348 = vpop.permute.xlu0 %347
          %v350 = vsel %vm227, %v304, %v345
          %v351 = vsel %vm252, %v350, %v348
          %352 = vrot.lane.b32.xlu0 %v193, 107
          %v353 = vpop.permute.xlu0 %352
          %v355 = vsel %vm194, %v353, 0.0
          %357 = vrot.lane.b32.xlu0 %v355, 116
          %v358 = vpop.permute.xlu0 %357
          %360 = vrot.lane.b32.xlu0 %v355, 4
          %v361 = vpop.permute.xlu0 %360
          %v363 = vsel %vm203, %v358, %v361
          %v364 = vsel %vm206, %v363, %v355
          %366 = vrot.lane.b32.xlu0 %v364, 114
          %v367 = vpop.permute.xlu0 %366
          %369 = vrot.lane.b32.xlu0 %v364, 2
          %v370 = vpop.permute.xlu0 %369
          %v372 = vsel %vm215, %v367, %v370
          %v373 = vsel %vm218, %v372, %v364
          %375 = vrot.lane.b32.xlu0 %v373, 113
          %v376 = vpop.permute.xlu0 %375
          %378 = vrot.lane.b32.xlu0 %v373, 1
          %v379 = vpop.permute.xlu0 %378
          %v381 = vsel %vm227, %v376, %v379
          %v382 = vsel %vm230, %v381, %v373
          %384 = vrot.lane.b32.xlu0 %v382, 113
          %v385 = vpop.permute.xlu0 %384
          %387 = vrot.lane.b32.xlu0 %v382, 1
          %v388 = vpop.permute.xlu0 %387
          %v390 = vsel %vm227, %v385, %v388
          %v391 = vsel %vm241, %v390, %v382
          %393 = vrot.lane.b32.xlu0 %v391, 1
          %v394 = vpop.permute.xlu0 %393
          %396 = vrot.lane.b32.xlu0 %v193, 116
          %v397 = vpop.permute.xlu0 %396
          %v399 = vsel %vm227, %v353, %v394
          %v400 = vsel %vm252, %v399, %v397
          %402 = vrot.lane.b32.xlu0 %v253, 16
          %v403 = vpop.permute.xlu0 %402
          %405 = vrot.lane.b32.xlu0 %v253, 32
          %v406 = vpop.permute.xlu0 %405
          %409 = vrot.lane.b32.xlu0 %v302, 48
          %v410 = vpop.permute.xlu0 %409
          %412 = vrot.lane.b32.xlu0 %v302, 64
          %v413 = vpop.permute.xlu0 %412
          %416 = vrot.lane.b32.xlu0 %v351, 80
          %v417 = vpop.permute.xlu0 %416
          %419 = vrot.lane.b32.xlu0 %v351, 96
          %v420 = vpop.permute.xlu0 %419
          %423 = vrot.lane.b32.xlu0 %v400, 112
          %v424 = vpop.permute.xlu0 %423
          %vm426 = vcmask 130048
          %v427 = vsel %vm426, %v253, %v403
          %vm428 = vcmask 261120
          %v429 = vsel %vm428, %v427, %v406
          %vm430 = vcmask 392192
          %v431 = vsel %vm430, %v429, %v410
          %vm432 = vcmask 523264
          %v433 = vsel %vm432, %v431, %v413
          %vm434 = vcmask 654336
          %v435 = vsel %vm434, %v433, %v417
          %vm436 = vcmask 785408
          %v437 = vsel %vm436, %v435, %v420
          %vm438 = vcmask 916480
          %v439 = vsel %vm438, %v437, %v424
          %440 = vst [vmem:[%s128] sm:$0xff] %v439
        $region32: #{tpu_custom_call.1} parent=23 // pred_fallthru
          _
        %p441 = scmp.eq.s32.totalorder %s21, 1
        // Predicated region
        $region33: #{tpu_custom_call.1} parent=23 // pred_check
          %p442 = pneg %p441
        $region34: #{tpu_custom_call.1} parent=23 // pred_check_branch
          %444 = sbr.rel (%p442) target = $region36
        $region35: #{tpu_custom_call.1} parent=23 // pred_region
          %v445 = vld [vmem:[#allocation2] sm:$0xff]
          %447 = vrot.lane.b32.xlu0 %v445, 107
          %v448 = vpop.permute.xlu0 %447
          %vm450 = vcmask 56320
          %v451 = vsel %vm450, %v448, 0.0
          %453 = vrot.lane.b32.xlu0 %v451, 116
          %v454 = vpop.permute.xlu0 %453
          %456 = vrot.lane.b32.xlu0 %v451, 4
          %v457 = vpop.permute.xlu0 %456
          %vm459 = vcmask 31744
          %v460 = vsel %vm459, %v454, %v457
          %v461 = vsel %vm145, 1, 0
          %vm462 = vcmp.eq.s32.totalorder %v461, 1
          %v463 = vsel %vm462, %v460, %v451
          %465 = vrot.lane.b32.xlu0 %v463, 114
          %v466 = vpop.permute.xlu0 %465
          %468 = vrot.lane.b32.xlu0 %v463, 2
          %v469 = vpop.permute.xlu0 %468
          %vm471 = vcmask 15360
          %v472 = vsel %vm471, %v466, %v469
          %v473 = vsel %vm160, 1, 0
          %vm474 = vcmp.eq.s32.totalorder %v473, 1
          %v475 = vsel %vm474, %v472, %v463
          %477 = vrot.lane.b32.xlu0 %v475, 113
          %v478 = vpop.permute.xlu0 %477
          %480 = vrot.lane.b32.xlu0 %v475, 1
          %v481 = vpop.permute.xlu0 %480
          %vm483 = vcmask 7168
          %v484 = vsel %vm483, %v478, %v481
          %v485 = vsel %vm175, 1, 0
          %vm486 = vcmp.eq.s32.totalorder %v485, 1
          %v487 = vsel %vm486, %v484, %v475
          %489 = vrot.lane.b32.xlu0 %v487, 113
          %v490 = vpop.permute.xlu0 %489
          %492 = vrot.lane.b32.xlu0 %v487, 1
          %v493 = vpop.permute.xlu0 %492
          %v495 = vsel %vm483, %v490, %v493
          %v496 = vsel %vm188, 1, 0
          %vm497 = vcmp.eq.s32.totalorder %v496, 1
          %v498 = vsel %vm497, %v495, %v487
          %500 = vrot.lane.b32.xlu0 %v498, 1
          %v501 = vpop.permute.xlu0 %500
          %503 = vrot.lane.b32.xlu0 %v445, 116
          %v504 = vpop.permute.xlu0 %503
          %v506 = vsel %vm483, %v448, %v501
          %vm507 = vcmask 121856
          %v508 = vsel %vm507, %v506, %v504
          %509 = vrot.lane.b32.xlu0 %v445, 100
          %v510 = vpop.permute.xlu0 %509
          %v512 = vsel %vm450, %v510, 0.0
          %514 = vrot.lane.b32.xlu0 %v512, 116
          %v515 = vpop.permute.xlu0 %514
          %517 = vrot.lane.b32.xlu0 %v512, 4
          %v518 = vpop.permute.xlu0 %517
          %v520 = vsel %vm459, %v515, %v518
          %v521 = vsel %vm462, %v520, %v512
          %523 = vrot.lane.b32.xlu0 %v521, 114
          %v524 = vpop.permute.xlu0 %523
          %526 = vrot.lane.b32.xlu0 %v521, 2
          %v527 = vpop.permute.xlu0 %526
          %v529 = vsel %vm471, %v524, %v527
          %v530 = vsel %vm474, %v529, %v521
          %532 = vrot.lane.b32.xlu0 %v530, 113
          %v533 = vpop.permute.xlu0 %532
          %535 = vrot.lane.b32.xlu0 %v530, 1
          %v536 = vpop.permute.xlu0 %535
          %v538 = vsel %vm483, %v533, %v536
          %v539 = vsel %vm486, %v538, %v530
          %541 = vrot.lane.b32.xlu0 %v539, 113
          %v542 = vpop.permute.xlu0 %541
          %544 = vrot.lane.b32.xlu0 %v539, 1
          %v545 = vpop.permute.xlu0 %544
          %v547 = vsel %vm483, %v542, %v545
          %v548 = vsel %vm497, %v547, %v539
          %550 = vrot.lane.b32.xlu0 %v548, 1
          %v551 = vpop.permute.xlu0 %550
          %553 = vrot.lane.b32.xlu0 %v445, 109
          %v554 = vpop.permute.xlu0 %553
          %v556 = vsel %vm483, %v510, %v551
          %v557 = vsel %vm507, %v556, %v554
          %558 = vrot.lane.b32.xlu0 %v445, 93
          %v559 = vpop.permute.xlu0 %558
          %v561 = vsel %vm450, %v559, 0.0
          %563 = vrot.lane.b32.xlu0 %v561, 116
          %v564 = vpop.permute.xlu0 %563
          %566 = vrot.lane.b32.xlu0 %v561, 4
          %v567 = vpop.permute.xlu0 %566
          %v569 = vsel %vm459, %v564, %v567
          %v570 = vsel %vm462, %v569, %v561
          %572 = vrot.lane.b32.xlu0 %v570, 114
          %v573 = vpop.permute.xlu0 %572
          %575 = vrot.lane.b32.xlu0 %v570, 2
          %v576 = vpop.permute.xlu0 %575
          %v578 = vsel %vm471, %v573, %v576
          %v579 = vsel %vm474, %v578, %v570
          %581 = vrot.lane.b32.xlu0 %v579, 113
          %v582 = vpop.permute.xlu0 %581
          %584 = vrot.lane.b32.xlu0 %v579, 1
          %v585 = vpop.permute.xlu0 %584
          %v587 = vsel %vm483, %v582, %v585
          %v588 = vsel %vm486, %v587, %v579
          %590 = vrot.lane.b32.xlu0 %v588, 113
          %v591 = vpop.permute.xlu0 %590
          %593 = vrot.lane.b32.xlu0 %v588, 1
          %v594 = vpop.permute.xlu0 %593
          %v596 = vsel %vm483, %v591, %v594
          %v597 = vsel %vm497, %v596, %v588
          %599 = vrot.lane.b32.xlu0 %v597, 1
          %v600 = vpop.permute.xlu0 %599
          %602 = vrot.lane.b32.xlu0 %v445, 102
          %v603 = vpop.permute.xlu0 %602
          %v605 = vsel %vm483, %v559, %v600
          %v606 = vsel %vm507, %v605, %v603
          %607 = vrot.lane.b32.xlu0 %v445, 86
          %v608 = vpop.permute.xlu0 %607
          %v610 = vsel %vm450, %v608, 0.0
          %612 = vrot.lane.b32.xlu0 %v610, 116
          %v613 = vpop.permute.xlu0 %612
          %615 = vrot.lane.b32.xlu0 %v610, 4
          %v616 = vpop.permute.xlu0 %615
          %v618 = vsel %vm459, %v613, %v616
          %v619 = vsel %vm462, %v618, %v610
          %621 = vrot.lane.b32.xlu0 %v619, 114
          %v622 = vpop.permute.xlu0 %621
          %624 = vrot.lane.b32.xlu0 %v619, 2
          %v625 = vpop.permute.xlu0 %624
          %v627 = vsel %vm471, %v622, %v625
          %v628 = vsel %vm474, %v627, %v619
          %630 = vrot.lane.b32.xlu0 %v628, 113
          %v631 = vpop.permute.xlu0 %630
          %633 = vrot.lane.b32.xlu0 %v628, 1
          %v634 = vpop.permute.xlu0 %633
          %v636 = vsel %vm483, %v631, %v634
          %v637 = vsel %vm486, %v636, %v628
          %639 = vrot.lane.b32.xlu0 %v637, 113
          %v640 = vpop.permute.xlu0 %639
          %642 = vrot.lane.b32.xlu0 %v637, 1
          %v643 = vpop.permute.xlu0 %642
          %v645 = vsel %vm483, %v640, %v643
          %v646 = vsel %vm497, %v645, %v637
          %648 = vrot.lane.b32.xlu0 %v646, 1
          %v649 = vpop.permute.xlu0 %648
          %651 = vrot.lane.b32.xlu0 %v445, 95
          %v652 = vpop.permute.xlu0 %651
          %v654 = vsel %vm483, %v608, %v649
          %v655 = vsel %vm507, %v654, %v652
          %657 = vrot.lane.b32.xlu0 %v557, 16
          %v658 = vpop.permute.xlu0 %657
          %660 = vrot.lane.b32.xlu0 %v557, 32
          %v661 = vpop.permute.xlu0 %660
          %664 = vrot.lane.b32.xlu0 %v606, 48
          %v665 = vpop.permute.xlu0 %664
          %667 = vrot.lane.b32.xlu0 %v606, 64
          %v668 = vpop.permute.xlu0 %667
          %671 = vrot.lane.b32.xlu0 %v655, 80
          %v672 = vpop.permute.xlu0 %671
          %674 = vrot.lane.b32.xlu0 %v655, 96
          %v675 = vpop.permute.xlu0 %674
          %677 = vrot.lane.b32.xlu0 %v655, 112
          %v678 = vpop.permute.xlu0 %677
          %vm680 = vcmask 130048
          %v681 = vsel %vm680, %v508, %v658
          %vm682 = vcmask 261120
          %v683 = vsel %vm682, %v681, %v661
          %vm684 = vcmask 392192
          %v685 = vsel %vm684, %v683, %v665
          %vm686 = vcmask 523264
          %v687 = vsel %vm686, %v685, %v668
          %vm688 = vcmask 654336
          %v689 = vsel %vm688, %v687, %v672
          %vm690 = vcmask 785408
          %v691 = vsel %vm690, %v689, %v675
          %vm692 = vcmask 916480
          %v693 = vsel %vm692, %v691, %v678
          %694 = vst [vmem:[%s128] sm:$0xff] %v693
        $region36: #{tpu_custom_call.1} parent=23 // pred_fallthru
          _
        %s695 = sand.u32 %s64, 1
        %s696 = scalar_lea.sflag [#allocation4], %s695
        %s697 = sand.u32 %s64, 1
        %s698 = smul.addr %s697, 8
        %s699 = scalar_lea.vmem [#allocation5], %s698
        // Predicated region
        $region37: #{tpu_custom_call.1} parent=23 // pred_check
          %p700 = pneg %p74
        $region38: #{tpu_custom_call.1} parent=23 // pred_check_branch
          %702 = sbr.rel (%p700) target = $region40
        $region39: #{tpu_custom_call.1} parent=23 // pred_region
          %s704 = ssub.s32 128, 128
          %705 = vsyncadd %s696, %s704
          %s706 = smul.addr %s20, 2
          %s707 = sadd.s32 %s21, %s706
          %s708 = smul.addr %s707, 128
          %s709 = scalar_lea.hbm %s1, %s708
          %s711 = sshll.u32 %s699, 4
          %s712 = int_to_ptr.vmem [resolvable:$true] %s711
          %714 = dma.vmem_to_hbm [thread:$0]  %s712, 128, %s709, %s696
        $region40: #{tpu_custom_call.1} parent=23 // pred_fallthru
          _
      $region24: #{tpu_custom_call.1} parent=5 // pred_fallthru
        _
      %p715 = scmp.le.s32.totalorder 2, %s11
      // Predicated region
      $region41: #{tpu_custom_call.1} parent=5 // pred_check
        %p716 = pneg %p715
      $region42: #{tpu_custom_call.1} parent=5 // pred_check_branch
        %718 = sbr.rel (%p716) target = $region44
      $region43: #{tpu_custom_call.1} parent=5 // pred_region
        %s719 = ssub.s32 %s11, 2
        // Predicated region
        $region45: #{tpu_custom_call.1} parent=43 // pred_check
          %p720 = pneg %p80
        $region46: #{tpu_custom_call.1} parent=43 // pred_check_branch
          %722 = sbr.rel (%p720) target = $region48
        $region47: #{tpu_custom_call.1} parent=43 // pred_region
          %s723 = sand.u32 %s65, 1
          %s724 = scalar_lea.sflag [#allocation4], %s723
          %s725 = sand.u32 %s65, 1
          %s726 = smul.addr %s725, 8
          %s727 = scalar_lea.vmem [#allocation5], %s726
          %728 = dma.done %s724, 128
        $region48: #{tpu_custom_call.1} parent=43 // pred_fallthru
          _
      $region44: #{tpu_custom_call.1} parent=5 // pred_fallthru
        _
    $region6: #{tpu_custom_call.1} parent=1 // loop_footer
      %s15 = sadd.s32 1, %s11
    $region7: #{tpu_custom_call.1} parent=1 // loop_footer_branch
      %10 = sbr.rel target = $region3
    $region8: #{tpu_custom_call.1} parent=1 // loop_exit
      _
    %729 = vsyncpa [#allocation3], 1
    %s730 = scalar_lea.sflag [#allocation3], 1
    %731 = vsyncpa %s730, 1
    %732 = vsyncpa [#allocation4], 1
    %s733 = scalar_lea.sflag [#allocation4], 1
    %734 = vsyncpa %s733, 1

</llo_original>
